<compile_context>
chip_gen: v5e
topology: v5e:2x2
jax: 0.10.0
libtpu: 0.0.40
codegen_flags: <defaults>
</compile_context>

<pallas_src>
import functools

import jax
import jax.numpy as jnp
from jax import lax
from jax.experimental import pallas as pl
from jax.experimental.pallas import tpu as pltpu


NUM_OBJECTS = 8
BATCH_SIZE = 2

LANES = 128
SUBLANES = 8
MAX_BLOCK_ROWS = 512  # 512*128*4 B = 256 KiB per f32 block -> portable to v7x VMEM


def _round_up(x, m):
    return ((x + m - 1) // m) * m


def _priority_encoder_kernel(pfac_ref, ifac_ref, prio_ref, noise_ref, out_ref,
                             *, num_objects, block_rows):
    """Elementwise hot path of PriorityEncoder.forward on a lane-dense block.

    pfac_ref  : SMEM (1,) f32  -- priority_factor parameter
    ifac_ref  : SMEM (1,) f32  -- index_factor parameter
    prio_ref  : VMEM (block_rows, 128) f32 -- flat priority block
    noise_ref : VMEM (block_rows, 128) f32 -- flat gaussian noise block
    out_ref   : VMEM (block_rows, 128) f32 -- flat output block
    """
    # Fold the scalar constants once (scalar work, free slots).
    pfac = pfac_ref[0]
    ifac = ifac_ref[0]
    s_p = pfac * (25.0 * float(num_objects))   # priority * num_objects * pfac * 25
    s_n = pfac * (25.0 * 0.1)                  # noise * 0.1 * pfac * 25
    s_i = ifac * 25.0                          # index * ifac * 25

    # Object index of each element in the flat '(b o)' layout.
    rows = lax.broadcasted_iota(jnp.int32, (block_rows, LANES), 0)
    lanes = lax.broadcasted_iota(jnp.int32, (block_rows, LANES), 1)
    flat = rows * LANES + lanes
    if (block_rows * LANES) % num_objects != 0:
        # Block length not a multiple of num_objects -> pattern depends on the
        # global offset of this block.
        flat = flat + pl.program_id(0) * (block_rows * LANES)
    if num_objects & (num_objects - 1) == 0:
        obj = jnp.bitwise_and(flat, num_objects - 1)
    else:
        obj = flat % num_objects
    idx_term = obj.astype(jnp.float32) * s_i

    out_ref[...] = prio_ref[...] * s_p + noise_ref[...] * s_n + idx_term


def priority_encoder(priority, priority_factor, index_factor, key, *, num_objects):
    """priority: (batch*num_objects, 1) f32 -> (batch, num_objects) f32.

    Matches PriorityEncoder.forward:
        p = priority * num_objects + randn_like(priority) * 0.1
        p = p * priority_factor + indices * index_factor
        return rearrange(p, '(b o) 1 -> b o') * 25
    """
    bo = priority.shape[0]
    assert bo % num_objects == 0
    batch = bo // num_objects

    # Lane-dense flat layout; row-major flatten matches '(b o) 1 -> b o'.
    prio_flat = priority.reshape(-1).astype(jnp.float32)

    # Fresh gaussian noise per call (== torch.randn_like); vary `key` per step.
    noise_flat = jax.random.normal(key, (bo,), dtype=jnp.float32)

    # Pad to an integer number of (block_rows, 128) blocks.
    total_rows = pl.cdiv(bo, LANES)
    block_rows = min(MAX_BLOCK_ROWS, _round_up(total_rows, SUBLANES))
    padded_rows = _round_up(total_rows, block_rows)
    padded = padded_rows * LANES
    n_blocks = padded_rows // block_rows

    prio_2d = jnp.zeros((padded,), jnp.float32).at[:bo].set(prio_flat)
    prio_2d = prio_2d.reshape(padded_rows, LANES)
    noise_2d = jnp.zeros((padded,), jnp.float32).at[:bo].set(noise_flat)
    noise_2d = noise_2d.reshape(padded_rows, LANES)

    pfac = jnp.asarray(priority_factor, jnp.float32).reshape(1)
    ifac = jnp.asarray(index_factor, jnp.float32).reshape(1)

    kernel = functools.partial(
        _priority_encoder_kernel, num_objects=num_objects, block_rows=block_rows)

    out_padded = pl.pallas_call(
        kernel,
        grid=(n_blocks,),
        out_shape=jax.ShapeDtypeStruct((padded_rows, LANES), jnp.float32),
        in_specs=[
            pl.BlockSpec(memory_space=pltpu.MemorySpace.SMEM),          # priority_factor
            pl.BlockSpec(memory_space=pltpu.MemorySpace.SMEM),          # index_factor
            pl.BlockSpec((block_rows, LANES), lambda i: (i, 0)),        # priority block
            pl.BlockSpec((block_rows, LANES), lambda i: (i, 0)),        # noise block
        ],
        out_specs=pl.BlockSpec((block_rows, LANES), lambda i: (i, 0)),
        compiler_params=pltpu.CompilerParams(
            dimension_semantics=("parallel",)),
    )(pfac, ifac, prio_2d, noise_2d)

    # Strip padding, restore (batch, num_objects).
    return out_padded.reshape(-1)[:bo].reshape(batch, num_objects)


if __name__ == "__main__":
    key = jax.random.PRNGKey(0)
    k_prio, k_noise = jax.random.split(key)

    # Module parameters (deterministic init, matching nn.Parameter(th.ones(1))).
    priority_factor = jnp.ones((1,), jnp.float32)
    index_factor = jnp.ones((1,), jnp.float32)

    # Example input: (batch*num_objects, 1), as the PyTorch forward expects.
    priority = jax.random.normal(
        k_prio, (BATCH_SIZE * NUM_OBJECTS, 1), dtype=jnp.float32)

    out = priority_encoder(
        priority, priority_factor, index_factor, k_noise, num_objects=NUM_OBJECTS)
    out = jax.block_until_ready(out)

    assert out.shape == (BATCH_SIZE, NUM_OBJECTS)
    assert out.dtype == jnp.float32
    assert bool(jnp.all(jnp.isfinite(out)))
    print("KERNEL_OK")
</pallas_src>

<mosaic_0001>
module attributes {stable_mosaic.version = 11 : i64} {
  func.func @_priority_encoder_kernel(%arg0: i32, %arg1: memref<1xf32, #tpu.memory_space<smem>>, %arg2: memref<1xf32, #tpu.memory_space<smem>>, %arg3: memref<8x128xf32, #tpu.memory_space<vmem>>, %arg4: memref<8x128xf32, #tpu.memory_space<vmem>>, %arg5: memref<8x128xf32, #tpu.memory_space<vmem>>) attributes {dimension_semantics = [#tpu.dimension_semantics<parallel>], iteration_bounds = array<i64: 1>, scalar_prefetch = 0 : i64, scratch_operands = 0 : i64, tpu.core_type = #tpu.core_type<tc>, window_params = [{transform_indices = @transform_0, window_bounds = array<i64: 1>}, {transform_indices = @transform_1, window_bounds = array<i64: 1>}, {transform_indices = @transform_2, window_bounds = array<i64: 8, 128>}, {transform_indices = @transform_3, window_bounds = array<i64: 8, 128>}, {transform_indices = @transform_4, window_bounds = array<i64: 8, 128>}]} {
    %c0 = arith.constant 0 : index
    %0 = memref.load %arg1[%c0] : memref<1xf32, #tpu.memory_space<smem>>
    %c0_0 = arith.constant 0 : index
    %1 = memref.load %arg2[%c0_0] : memref<1xf32, #tpu.memory_space<smem>>
    %cst = arith.constant 2.000000e+02 : f32
    %2 = arith.mulf %0, %cst : f32
    %cst_1 = arith.constant 2.500000e+00 : f32
    %3 = arith.mulf %0, %cst_1 : f32
    %cst_2 = arith.constant 2.500000e+01 : f32
    %4 = arith.mulf %1, %cst_2 : f32
    %5 = tpu.iota {dimensions = array<i32: 0>} : vector<8x128xi32>
    %6 = tpu.iota {dimensions = array<i32: 1>} : vector<8x128xi32>
    %c128_i32 = arith.constant 128 : i32
    %7 = vector.broadcast %c128_i32 : i32 to vector<8x128xi32>
    %8 = arith.muli %5, %7 : vector<8x128xi32>
    %9 = arith.addi %8, %6 : vector<8x128xi32>
    %c7_i32 = arith.constant 7 : i32
    %10 = vector.broadcast %c7_i32 : i32 to vector<8x128xi32>
    %11 = arith.andi %9, %10 : vector<8x128xi32>
    %12 = arith.sitofp %11 : vector<8x128xi32> to vector<8x128xf32>
    %13 = vector.broadcast %4 : f32 to vector<8x128xf32>
    %14 = arith.mulf %12, %13 : vector<8x128xf32>
    %c0_3 = arith.constant 0 : index
    %c0_4 = arith.constant 0 : index
    %15 = vector.load %arg3[%c0_3, %c0_4] : memref<8x128xf32, #tpu.memory_space<vmem>>, vector<8x128xf32>
    %16 = vector.broadcast %2 : f32 to vector<8x128xf32>
    %17 = arith.mulf %15, %16 : vector<8x128xf32>
    %c0_5 = arith.constant 0 : index
    %c0_6 = arith.constant 0 : index
    %18 = vector.load %arg4[%c0_5, %c0_6] : memref<8x128xf32, #tpu.memory_space<vmem>>, vector<8x128xf32>
    %19 = vector.broadcast %3 : f32 to vector<8x128xf32>
    %20 = arith.mulf %18, %19 : vector<8x128xf32>
    %21 = arith.addf %17, %20 : vector<8x128xf32>
    %22 = arith.addf %21, %14 : vector<8x128xf32>
    %c0_7 = arith.constant 0 : index
    %c0_8 = arith.constant 0 : index
    %23 = vector.load %arg5[%c0_7, %c0_8] : memref<8x128xf32, #tpu.memory_space<vmem>>, vector<8x128xf32>
    tpu.vector_store %arg5[%c0_7, %c0_8], %22 {strides = array<i32>} : memref<8x128xf32, #tpu.memory_space<vmem>>, vector<8x128xf32>,
    return
  }
  func.func @transform_0(%arg0: i32) -> i32 {
    %c0_i32 = arith.constant 0 : i32
    %c0_i32_0 = arith.constant 0 : i32
    return %c0_i32 : i32
  }
  func.func @transform_1(%arg0: i32) -> i32 {
    %c0_i32 = arith.constant 0 : i32
    %c0_i32_0 = arith.constant 0 : i32
    return %c0_i32 : i32
  }
  func.func @transform_2(%arg0: i32) -> (i32, i32) {
    %c0_i32 = arith.constant 0 : i32
    %c0_i32_0 = arith.constant 0 : i32
    return %arg0, %c0_i32 : i32, i32
  }
  func.func @transform_3(%arg0: i32) -> (i32, i32) {
    %c0_i32 = arith.constant 0 : i32
    %c0_i32_0 = arith.constant 0 : i32
    return %arg0, %c0_i32 : i32, i32
  }
  func.func @transform_4(%arg0: i32) -> (i32, i32) {
    %c0_i32 = arith.constant 0 : i32
    %c0_i32_0 = arith.constant 0 : i32
    return %arg0, %c0_i32 : i32, i32
  }
}

</mosaic_0001>

<llo_original>
// kernel: tpu_custom_call.1
$region0: #{tpu_custom_call.1}
  #allocation0 [shape = 'u32[]', space=smem, size = 0x4, offset = 0x4, fixed_abs, tag = 'smem constant byte address 0x4 - core index']
  #allocation1 [shape = 'u32[72,128]{1,0:T(1,128)}', space=vmem, size = 0x9000, scoped, tag = 'internal scratch']
  #allocation2 [shape = 'f32[1]{0:T(128)S(6)}', space=smem, size = 0x200, scoped, tag = 'scoped memory for tpu_custom_call.1']
  #allocation3 [shape = 'f32[1]{0:T(128)S(6)}', space=smem, size = 0x200, scoped, tag = 'scoped memory for tpu_custom_call.1']
  %s0 = inlined_call_operand.<no memory space> [shape: f32[1], index: 0, kind: input, shape index: {}]
  %s1 = inlined_call_operand.<no memory space> [shape: f32[1], index: 1, kind: input, shape index: {}]
  %s2 = inlined_call_operand.hbm [shape: f32[8,128], index: 2, kind: input, shape index: {}]
  %s3 = inlined_call_operand.hbm [shape: f32[8,128], index: 3, kind: input, shape index: {}]
  %s4 = inlined_call_operand.hbm [shape: f32[8,128], index: 4, kind: output, shape index: {}]
  %s5 = sld [smem:[#allocation0]]
  $region34: #{tpu_custom_call.1} parent=0
    _
  %s7 = ssub.s32 1, %s5
  %s8 = scalar_select 0, %s7, %s5
  %9 = sst [smem:[#allocation2]] %s0
  %10 = sst [smem:[#allocation3]] %s1
  $region1: #{tpu_custom_call.1} parent=0
    #allocation4 [shape = 'u8[4096]{0}', space=vmem, size = 0x1000, scoped, tag = 'input window, operand 2, single buffered']
    #allocation5 [shape = 's32[1]{0}', space=sflag, size = 0x4, scoped, tag = 'scoped memory for tpu_custom_call.1']
    #allocation6 [shape = 's32[1]{0}', space=sflag, size = 0x4, scoped, tag = 'scoped memory for tpu_custom_call.1']
    #allocation7 [shape = 'u8[4096]{0}', space=vmem, size = 0x1000, scoped, tag = 'input window, operand 3, single buffered']
    #allocation8 [shape = 's32[1]{0}', space=sflag, size = 0x4, scoped, tag = 'scoped memory for tpu_custom_call.1']
    #allocation9 [shape = 'u8[4096]{0}', space=vmem, size = 0x1000, scoped, tag = 'output window, operand 0, single buffered']
    %11 = vsyncpa [#allocation5], 0
    %12 = vsyncpa [#allocation8], 0
    %13 = vsyncpa [#allocation6], 0
    // Predicated region
    $region2: #{tpu_custom_call.1} parent=1 // pred_check
      _
    $region3: #{tpu_custom_call.1} parent=1 // pred_check_branch
      %15 = sbr.rel (0) target = $region5
    $region4: #{tpu_custom_call.1} parent=1 // pred_region
      _
    $region5: #{tpu_custom_call.1} parent=1 // pred_fallthru
      _
    // Predicated region
    $region6: #{tpu_custom_call.1} parent=1 // pred_check
      _
    $region7: #{tpu_custom_call.1} parent=1 // pred_check_branch
      %17 = sbr.rel (0) target = $region9
    $region8: #{tpu_custom_call.1} parent=1 // pred_region
      _
    $region9: #{tpu_custom_call.1} parent=1 // pred_fallthru
      _
    // Predicated region
    $region10: #{tpu_custom_call.1} parent=1 // pred_check
      _
    $region11: #{tpu_custom_call.1} parent=1 // pred_check_branch
      %19 = sbr.rel (0) target = $region13
    $region12: #{tpu_custom_call.1} parent=1 // pred_region
      %21 = vsyncadd [#allocation5], 0
      %s23 = sshll.u32 %s2, 4
      %s24 = int_to_ptr.hbm [resolvable:$true] %s23
      %s25 = sshll.u32 [#allocation4], 4
      %s26 = int_to_ptr.vmem [resolvable:$true] %s25
      %28 = dma.hbm_to_vmem [thread:$0]  %s24, 128, %s26, [#allocation5]
    $region13: #{tpu_custom_call.1} parent=1 // pred_fallthru
      _
    // Predicated region
    $region14: #{tpu_custom_call.1} parent=1 // pred_check
      _
    $region15: #{tpu_custom_call.1} parent=1 // pred_check_branch
      %30 = sbr.rel (0) target = $region17
    $region16: #{tpu_custom_call.1} parent=1 // pred_region
      %32 = vsyncadd [#allocation8], 0
      %s34 = sshll.u32 %s3, 4
      %s35 = int_to_ptr.hbm [resolvable:$true] %s34
      %s36 = sshll.u32 [#allocation7], 4
      %s37 = int_to_ptr.vmem [resolvable:$true] %s36
      %39 = dma.hbm_to_vmem [thread:$0]  %s35, 128, %s37, [#allocation8]
    $region17: #{tpu_custom_call.1} parent=1 // pred_fallthru
      _
    // Predicated region
    $region18: #{tpu_custom_call.1} parent=1 // pred_check
      _
    $region19: #{tpu_custom_call.1} parent=1 // pred_check_branch
      %41 = sbr.rel (0) target = $region21
    $region20: #{tpu_custom_call.1} parent=1 // pred_region
      %43 = dma.done [#allocation5], 128
    $region21: #{tpu_custom_call.1} parent=1 // pred_fallthru
      _
    // Predicated region
    $region22: #{tpu_custom_call.1} parent=1 // pred_check
      _
    $region23: #{tpu_custom_call.1} parent=1 // pred_check_branch
      %45 = sbr.rel (0) target = $region25
    $region24: #{tpu_custom_call.1} parent=1 // pred_region
      %47 = dma.done [#allocation8], 128
    $region25: #{tpu_custom_call.1} parent=1 // pred_fallthru
      _
    %s48 = sld [smem:[#allocation2]]
    %s49 = sld [smem:[#allocation3]]
    %s50 = smul.f32 %s48, 200.0
    %s51 = smul.f32 %s48, 2.5
    %s52 = smul.f32 %s49, 25.0
    %v53 = vlaneseq
    %v54 = vshrl.u32 %v53, 7
    %v55 = vlaneseq
    %v56 = vand.u32 %v55, 127
    %v57 = vmul.u32 %v54, 128
    %v58 = vadd.s32 %v57, %v56
    %v59 = vand.u32 %v58, 7
    %v60 = vcvt.s32.f32 %v59
    %v61 = vstv %s52
    %v62 = vmul.f32 %v60, %v61
    %v63 = vld [vmem:[#allocation4] sm:$0xff]
    %v64 = vstv %s50
    %v65 = vmul.f32 %v63, %v64
    %v66 = vld [vmem:[#allocation7] sm:$0xff]
    %v67 = vstv %s51
    %v68 = vmul.f32 %v66, %v67
    %v69 = vadd.f32 %v65, %v68
    %v70 = vadd.f32 %v69, %v62
    %71 = vst [vmem:[#allocation9] sm:$0xff] %v70
    // Predicated region
    $region26: #{tpu_custom_call.1} parent=1 // pred_check
      _
    $region27: #{tpu_custom_call.1} parent=1 // pred_check_branch
      %73 = sbr.rel (0) target = $region29
    $region28: #{tpu_custom_call.1} parent=1 // pred_region
      %75 = vsyncadd [#allocation6], 0
      %s77 = sshll.u32 [#allocation9], 4
      %s78 = int_to_ptr.vmem [resolvable:$true] %s77
      %s79 = sshll.u32 %s4, 4
      %s80 = int_to_ptr.hbm [resolvable:$true] %s79
      %82 = dma.vmem_to_hbm [thread:$0]  %s78, 128, %s80, [#allocation6]
    $region29: #{tpu_custom_call.1} parent=1 // pred_fallthru
      _
    // Predicated region
    $region30: #{tpu_custom_call.1} parent=1 // pred_check
      _
    $region31: #{tpu_custom_call.1} parent=1 // pred_check_branch
      %84 = sbr.rel (0) target = $region33
    $region32: #{tpu_custom_call.1} parent=1 // pred_region
      %86 = dma.done [#allocation6], 128
    $region33: #{tpu_custom_call.1} parent=1 // pred_fallthru
      _
    %87 = vsyncpa [#allocation5], 1
    %88 = vsyncpa [#allocation8], 1
    %89 = vsyncpa [#allocation6], 1

</llo_original>
